<compile_context>
chip_gen: v7x
topology: tpu7x:2x2x1
jax: 0.10.0
libtpu: 0.0.40
codegen_flags: <defaults>
</compile_context>

<pallas_src>
import functools

import jax
import jax.numpy as jnp
import numpy as np
from jax.experimental import pallas as pl
from jax.experimental.pallas import tpu as pltpu


def _choose_tile_rows(n_rows: int, n_cols: int, n_keys: int, itemsize: int,
                      budget_bytes: int = 24 * 1024 * 1024) -> int:
    """Pick a batch-tile size that keeps double-buffered inputs under the VMEM budget."""
    # Per grid step: 2 buffers x (query + n_keys keys) x TN x C x itemsize.
    per_row = 2 * (n_keys + 1) * n_cols * itemsize
    tn = budget_bytes // max(per_row, 1)
    tn = max(8, min(512, (tn // 8) * 8))      # multiple of 8 sublanes, capped at 512 rows
    if n_rows <= tn:
        return n_rows                          # single tile; "equals full dim" is always legal
    return tn


def _infonce_kernel(q_ref, *refs, temperature: float, n_rows: int,
                    tile_rows: int, n_keys: int):
    # refs = (pos_key_ref, neg_key_ref_0, ..., neg_key_ref_{K-1}, out_ref)
    key_refs = refs[:n_keys]
    o_ref = refs[n_keys]

    q = q_ref[...]                                     # (TN, C), original dtype
    inv_t = jnp.float32(1.0 / temperature)

    def row_dot(k_ref):
        # Multiply in the input dtype, accumulate the lane reduction in f32.
        return jnp.sum(q * k_ref[...], axis=-1, keepdims=True,
                       dtype=jnp.float32) * inv_t      # (TN, 1) f32

    # Online (max-stabilized) logsumexp over the K+1 logits; positive key is class 0.
    l_pos = row_dot(key_refs[0])                       # (TN, 1)
    m = l_pos
    s = jnp.ones_like(l_pos)                           # exp(l_pos - m) == 1
    for j in range(1, n_keys):                         # unrolled; one key slice live at a time
        l = row_dot(key_refs[j])
        m_new = jnp.maximum(m, l)
        s = s * jnp.exp(m - m_new) + jnp.exp(l - m_new)
        m = m_new

    # Cross-entropy with labels == 0: loss_n = logsumexp_j(logits) - logits[:, 0]
    loss_rows = (m + jnp.log(s)) - l_pos               # (TN, 1)

    # Mask rows past the true batch size (partial last tile reads undefined data).
    row_ids = (pl.program_id(0) * tile_rows
               + jax.lax.broadcasted_iota(jnp.int32, (tile_rows, 1), 0))
    partial = jnp.sum(jnp.where(row_ids < n_rows, loss_rows, 0.0))

    # Lane-dense per-tile partial sum; every grid step owns its own output block.
    o_ref[...] = jnp.full((1, 1, 128), partial, dtype=jnp.float32)


def infonce_contrastive_loss(query_repr, positive_key_repr, negative_keys_repr_list,
                             temperature: float = 0.1, tile_rows=None):
    """Matches InfoNCEContrastiveLossModule.forward (returns a scalar f32 loss)."""
    keys = [positive_key_repr] + list(negative_keys_repr_list)
    n_keys = len(keys)
    n_rows, n_cols = query_repr.shape
    itemsize = jnp.dtype(query_repr.dtype).itemsize

    tn = tile_rows if tile_rows is not None else _choose_tile_rows(
        n_rows, n_cols, n_keys, itemsize)
    num_tiles = pl.cdiv(n_rows, tn)

    kernel = functools.partial(
        _infonce_kernel, temperature=float(temperature),
        n_rows=n_rows, tile_rows=tn, n_keys=n_keys)

    row_spec = pl.BlockSpec((tn, n_cols), lambda i: (i, 0))
    partial_sums = pl.pallas_call(
        kernel,
        out_shape=jax.ShapeDtypeStruct((num_tiles, 1, 128), jnp.float32),
        grid=(num_tiles,),
        in_specs=[row_spec] * (n_keys + 1),            # query + positive + K negatives
        out_specs=pl.BlockSpec((1, 1, 128), lambda i: (i, 0, 0)),
        compiler_params=pltpu.CompilerParams(
            dimension_semantics=("parallel",),
            vmem_limit_bytes=32 * 1024 * 1024),
    )(query_repr, *keys)

    # Tiny cross-tile reduction + mean in plain JAX.
    return jnp.sum(partial_sums[:, 0, 0]) / n_rows


def _reference_loss(query, positive, negatives, temperature):
    # Pure-JAX reference of the PyTorch forward (for sanity checking).
    l_pos = jnp.sum(query * positive, axis=-1, keepdims=True)            # (N, 1)
    l_negs = [jnp.sum(query * neg, axis=-1, keepdims=True) for neg in negatives]
    logits = jnp.concatenate([l_pos] + l_negs, axis=1) / temperature     # (N, 1+K)
    log_probs = jax.nn.log_softmax(logits, axis=-1)
    return -jnp.mean(log_probs[:, 0])


if __name__ == "__main__":
    key = jax.random.PRNGKey(0)

    # Test 1: small, lane-dense feature dim (C multiple of 128), f32, single tile.
    N, C, K = 8, 128, 3
    temperature = 0.1
    kq, kp, kn = jax.random.split(key, 3)
    query = jax.random.normal(kq, (N, C), dtype=jnp.float32)
    positive = jax.random.normal(kp, (N, C), dtype=jnp.float32)
    negatives = [jax.random.normal(k, (N, C), dtype=jnp.float32)
                 for k in jax.random.split(kn, K)]

    loss = jax.block_until_ready(
        infonce_contrastive_loss(query, positive, negatives, temperature))
    ref = _reference_loss(query, positive, negatives, temperature)
    np.testing.assert_allclose(np.asarray(loss), np.asarray(ref), rtol=1e-5, atol=1e-5)

    # Test 2: multi-tile grid with a partial last tile (exercises row masking), forced TN=8.
    N2, C2, K2 = 20, 128, 2
    kq2, kp2, kn2 = jax.random.split(jax.random.PRNGKey(1), 3)
    query2 = jax.random.normal(kq2, (N2, C2), dtype=jnp.float32)
    positive2 = jax.random.normal(kp2, (N2, C2), dtype=jnp.float32)
    negatives2 = [jax.random.normal(k, (N2, C2), dtype=jnp.float32)
                  for k in jax.random.split(kn2, K2)]
    loss2 = jax.block_until_ready(
        infonce_contrastive_loss(query2, positive2, negatives2, temperature, tile_rows=8))
    ref2 = _reference_loss(query2, positive2, negatives2, temperature)
    np.testing.assert_allclose(np.asarray(loss2), np.asarray(ref2), rtol=1e-5, atol=1e-5)

    # Test 3: bf16 inputs (bf16 multiply, f32 accumulation); loose tolerance.
    q_bf = query.astype(jnp.bfloat16)
    p_bf = positive.astype(jnp.bfloat16)
    n_bf = [n.astype(jnp.bfloat16) for n in negatives]
    loss3 = jax.block_until_ready(
        infonce_contrastive_loss(q_bf, p_bf, n_bf, temperature=1.0))
    ref3 = _reference_loss(q_bf.astype(jnp.float32), p_bf.astype(jnp.float32),
                           [n.astype(jnp.float32) for n in n_bf], temperature=1.0)
    np.testing.assert_allclose(np.asarray(loss3), np.asarray(ref3), rtol=5e-2, atol=5e-2)

    print("KERNEL_OK")
</pallas_src>

<mosaic_0001>
module attributes {stable_mosaic.version = 11 : i64} {
  func.func @_infonce_kernel(%arg0: i32, %arg1: memref<8x128xf32, #tpu.memory_space<vmem>>, %arg2: memref<8x128xf32, #tpu.memory_space<vmem>>, %arg3: memref<8x128xf32, #tpu.memory_space<vmem>>, %arg4: memref<8x128xf32, #tpu.memory_space<vmem>>, %arg5: memref<8x128xf32, #tpu.memory_space<vmem>>, %arg6: memref<1x1x128xf32, #tpu.memory_space<vmem>>) attributes {dimension_semantics = [#tpu.dimension_semantics<parallel>], iteration_bounds = array<i64: 1>, scalar_prefetch = 0 : i64, scratch_operands = 0 : i64, tpu.core_type = #tpu.core_type<tc>, window_params = [{transform_indices = @transform_0, window_bounds = array<i64: 8, 128>}, {transform_indices = @transform_1, window_bounds = array<i64: 8, 128>}, {transform_indices = @transform_2, window_bounds = array<i64: 8, 128>}, {transform_indices = @transform_3, window_bounds = array<i64: 8, 128>}, {transform_indices = @transform_4, window_bounds = array<i64: 8, 128>}, {transform_indices = @transform_5, window_bounds = array<i64: 1, 1, 128>}]} {
    %c0 = arith.constant 0 : index
    %c0_0 = arith.constant 0 : index
    %0 = vector.load %arg1[%c0, %c0_0] : memref<8x128xf32, #tpu.memory_space<vmem>>, vector<8x128xf32>
    %c0_1 = arith.constant 0 : index
    %c0_2 = arith.constant 0 : index
    %1 = vector.load %arg2[%c0_1, %c0_2] : memref<8x128xf32, #tpu.memory_space<vmem>>, vector<8x128xf32>
    %2 = arith.mulf %0, %1 : vector<8x128xf32>
    %cst = arith.constant dense<0.000000e+00> : vector<8xf32>
    %3 = vector.multi_reduction <add>, %2, %cst [1] : vector<8x128xf32> to vector<8xf32>
    %4 = vector.shape_cast %3 : vector<8xf32> to vector<8x1xf32>
    %cst_3 = arith.constant 1.000000e+01 : f32
    %5 = vector.broadcast %cst_3 : f32 to vector<8x1xf32>
    %6 = arith.mulf %4, %5 : vector<8x1xf32>
    %cst_4 = arith.constant 1.000000e+00 : f32
    %7 = vector.broadcast %cst_4 : f32 to vector<8x1xf32>
    %c0_5 = arith.constant 0 : index
    %c0_6 = arith.constant 0 : index
    %8 = vector.load %arg3[%c0_5, %c0_6] : memref<8x128xf32, #tpu.memory_space<vmem>>, vector<8x128xf32>
    %9 = arith.mulf %0, %8 : vector<8x128xf32>
    %cst_7 = arith.constant dense<0.000000e+00> : vector<8xf32>
    %10 = vector.multi_reduction <add>, %9, %cst_7 [1] : vector<8x128xf32> to vector<8xf32>
    %11 = vector.shape_cast %10 : vector<8xf32> to vector<8x1xf32>
    %cst_8 = arith.constant 1.000000e+01 : f32
    %12 = vector.broadcast %cst_8 : f32 to vector<8x1xf32>
    %13 = arith.mulf %11, %12 : vector<8x1xf32>
    %14 = arith.maximumf %6, %13 : vector<8x1xf32>
    %15 = arith.subf %6, %14 : vector<8x1xf32>
    %16 = math.exp %15 : vector<8x1xf32>
    %17 = arith.mulf %7, %16 : vector<8x1xf32>
    %18 = arith.subf %13, %14 : vector<8x1xf32>
    %19 = math.exp %18 : vector<8x1xf32>
    %20 = arith.addf %17, %19 : vector<8x1xf32>
    %c0_9 = arith.constant 0 : index
    %c0_10 = arith.constant 0 : index
    %21 = vector.load %arg4[%c0_9, %c0_10] : memref<8x128xf32, #tpu.memory_space<vmem>>, vector<8x128xf32>
    %22 = arith.mulf %0, %21 : vector<8x128xf32>
    %cst_11 = arith.constant dense<0.000000e+00> : vector<8xf32>
    %23 = vector.multi_reduction <add>, %22, %cst_11 [1] : vector<8x128xf32> to vector<8xf32>
    %24 = vector.shape_cast %23 : vector<8xf32> to vector<8x1xf32>
    %cst_12 = arith.constant 1.000000e+01 : f32
    %25 = vector.broadcast %cst_12 : f32 to vector<8x1xf32>
    %26 = arith.mulf %24, %25 : vector<8x1xf32>
    %27 = arith.maximumf %14, %26 : vector<8x1xf32>
    %28 = arith.subf %14, %27 : vector<8x1xf32>
    %29 = math.exp %28 : vector<8x1xf32>
    %30 = arith.mulf %20, %29 : vector<8x1xf32>
    %31 = arith.subf %26, %27 : vector<8x1xf32>
    %32 = math.exp %31 : vector<8x1xf32>
    %33 = arith.addf %30, %32 : vector<8x1xf32>
    %c0_13 = arith.constant 0 : index
    %c0_14 = arith.constant 0 : index
    %34 = vector.load %arg5[%c0_13, %c0_14] : memref<8x128xf32, #tpu.memory_space<vmem>>, vector<8x128xf32>
    %35 = arith.mulf %0, %34 : vector<8x128xf32>
    %cst_15 = arith.constant dense<0.000000e+00> : vector<8xf32>
    %36 = vector.multi_reduction <add>, %35, %cst_15 [1] : vector<8x128xf32> to vector<8xf32>
    %37 = vector.shape_cast %36 : vector<8xf32> to vector<8x1xf32>
    %cst_16 = arith.constant 1.000000e+01 : f32
    %38 = vector.broadcast %cst_16 : f32 to vector<8x1xf32>
    %39 = arith.mulf %37, %38 : vector<8x1xf32>
    %40 = arith.maximumf %27, %39 : vector<8x1xf32>
    %41 = arith.subf %27, %40 : vector<8x1xf32>
    %42 = math.exp %41 : vector<8x1xf32>
    %43 = arith.mulf %33, %42 : vector<8x1xf32>
    %44 = arith.subf %39, %40 : vector<8x1xf32>
    %45 = math.exp %44 : vector<8x1xf32>
    %46 = arith.addf %43, %45 : vector<8x1xf32>
    %47 = math.log %46 : vector<8x1xf32>
    %48 = arith.addf %40, %47 : vector<8x1xf32>
    %49 = arith.subf %48, %6 : vector<8x1xf32>
    %c8_i32 = arith.constant 8 : i32
    %50 = arith.muli %arg0, %c8_i32 : i32
    %51 = tpu.iota {dimensions = array<i32: 0>} : vector<8x1xi32>
    %52 = vector.broadcast %50 : i32 to vector<8x1xi32>
    %53 = arith.addi %52, %51 : vector<8x1xi32>
    %c8_i32_17 = arith.constant 8 : i32
    %54 = vector.broadcast %c8_i32_17 : i32 to vector<8x1xi32>
    %55 = arith.cmpi slt, %53, %54 : vector<8x1xi32>
    %cst_18 = arith.constant 0.000000e+00 : f32
    %56 = vector.broadcast %cst_18 : f32 to vector<8x1xf32>
    %57 = arith.select %55, %49, %56 : vector<8x1xi1>, vector<8x1xf32>
    %58 = vector.shape_cast %57 : vector<8x1xf32> to vector<1x8x1xf32>
    %cst_19 = arith.constant dense<0.000000e+00> : vector<1xf32>
    %59 = vector.multi_reduction <add>, %58, %cst_19 [1, 2] : vector<1x8x1xf32> to vector<1xf32>
    %60 = vector.shape_cast %59 : vector<1xf32> to vector<1x1x1xf32>
    %61 = vector.extract %60[0, 0, 0] : f32 from vector<1x1x1xf32>
    %62 = vector.broadcast %61 : f32 to vector<1x1x128xf32>
    %c0_20 = arith.constant 0 : index
    %c0_21 = arith.constant 0 : index
    %c0_22 = arith.constant 0 : index
    %63 = vector.load %arg6[%c0_20, %c0_21, %c0_22] : memref<1x1x128xf32, #tpu.memory_space<vmem>>, vector<1x1x128xf32>
    tpu.vector_store %arg6[%c0_20, %c0_21, %c0_22], %62 {strides = array<i32>} : memref<1x1x128xf32, #tpu.memory_space<vmem>>, vector<1x1x128xf32>,
    return
  }
  func.func @transform_0(%arg0: i32) -> (i32, i32) {
    %c0_i32 = arith.constant 0 : i32
    %c0_i32_0 = arith.constant 0 : i32
    return %arg0, %c0_i32 : i32, i32
  }
  func.func @transform_1(%arg0: i32) -> (i32, i32) {
    %c0_i32 = arith.constant 0 : i32
    %c0_i32_0 = arith.constant 0 : i32
    return %arg0, %c0_i32 : i32, i32
  }
  func.func @transform_2(%arg0: i32) -> (i32, i32) {
    %c0_i32 = arith.constant 0 : i32
    %c0_i32_0 = arith.constant 0 : i32
    return %arg0, %c0_i32 : i32, i32
  }
  func.func @transform_3(%arg0: i32) -> (i32, i32) {
    %c0_i32 = arith.constant 0 : i32
    %c0_i32_0 = arith.constant 0 : i32
    return %arg0, %c0_i32 : i32, i32
  }
  func.func @transform_4(%arg0: i32) -> (i32, i32) {
    %c0_i32 = arith.constant 0 : i32
    %c0_i32_0 = arith.constant 0 : i32
    return %arg0, %c0_i32 : i32, i32
  }
  func.func @transform_5(%arg0: i32) -> (i32, i32, i32) {
    %c0_i32 = arith.constant 0 : i32
    %c0_i32_0 = arith.constant 0 : i32
    %c0_i32_1 = arith.constant 0 : i32
    return %arg0, %c0_i32, %c0_i32_0 : i32, i32, i32
  }
}

</mosaic_0001>

<llo_original>
// kernel: tpu_custom_call.1
$region0: #{tpu_custom_call.1}
  #allocation0 [shape = 'u32[]', space=smem, size = 0x4, offset = 0x4, fixed_abs, tag = 'smem constant byte address 0x4 - core index']
  #allocation1 [shape = 'u32[144,128]{1,0:T(1,128)}', space=vmem, size = 0x12000, scoped, tag = 'internal scratch']
  %s0 = inlined_call_operand.hbm [shape: f32[8,128], index: 0, kind: input, shape index: {}]
  %s1 = inlined_call_operand.hbm [shape: f32[8,128], index: 1, kind: input, shape index: {}]
  %s2 = inlined_call_operand.hbm [shape: f32[8,128], index: 2, kind: input, shape index: {}]
  %s3 = inlined_call_operand.vmem [shape: f32[8,128], index: 3, kind: input, shape index: {}]
  %s4 = inlined_call_operand.hbm [shape: f32[8,128], index: 4, kind: input, shape index: {}]
  %s5 = inlined_call_operand.hbm [shape: f32[1,1,128], index: 5, kind: output, shape index: {}]
  %s6 = sld [smem:[#allocation0]]
  $region46: #{tpu_custom_call.1} parent=0
    _
  %s8 = ssub.s32 1, %s6
  %s9 = scalar_select 0, %s8, %s6
  $region1: #{tpu_custom_call.1} parent=0
    #allocation2 [shape = 'u8[4096]{0}', space=vmem, size = 0x1000, scoped, tag = 'input window, operand 0, single buffered']
    #allocation3 [shape = 's32[1]{0}', space=sflag, size = 0x4, scoped, tag = 'scoped memory for tpu_custom_call.1']
    #allocation4 [shape = 's32[1]{0}', space=sflag, size = 0x4, scoped, tag = 'scoped memory for tpu_custom_call.1']
    #allocation5 [shape = 'u8[4096]{0}', space=vmem, size = 0x1000, scoped, tag = 'input window, operand 1, single buffered']
    #allocation6 [shape = 's32[1]{0}', space=sflag, size = 0x4, scoped, tag = 'scoped memory for tpu_custom_call.1']
    #allocation7 [shape = 'u8[4096]{0}', space=vmem, size = 0x1000, scoped, tag = 'input window, operand 2, single buffered']
    #allocation8 [shape = 'u8[4096]{0}', space=vmem, size = 0x1000, scoped, tag = 'input window, operand 4, single buffered']
    #allocation9 [shape = 's32[1]{0}', space=sflag, size = 0x4, scoped, tag = 'scoped memory for tpu_custom_call.1']
    #allocation10 [shape = 'u8[512]{0}', space=vmem, size = 0x400, scoped, tag = 'output window, operand 0, single buffered']
    %10 = vsyncpa [#allocation3], 0
    %11 = vsyncpa [#allocation6], 0
    %12 = vsyncpa [#allocation9], 0
    %13 = vsyncpa [#allocation4], 0
    // Predicated region
    $region2: #{tpu_custom_call.1} parent=1 // pred_check
      _
    $region3: #{tpu_custom_call.1} parent=1 // pred_check_branch
      %15 = sbr.rel (0) target = $region5
    $region4: #{tpu_custom_call.1} parent=1 // pred_region
      %s17 = ssub.s32 128, 128
      %18 = vsyncadd [#allocation3], %s17
      %s20 = sshll.u32 [#allocation2], 4
      %s21 = int_to_ptr.vmem [resolvable:$true] %s20
      %23 = dma.hbm_to_vmem [thread:$0]  %s0, 128, %s21, [#allocation3]
    $region5: #{tpu_custom_call.1} parent=1 // pred_fallthru
      _
    // Predicated region
    $region6: #{tpu_custom_call.1} parent=1 // pred_check
      _
    $region7: #{tpu_custom_call.1} parent=1 // pred_check_branch
      %25 = sbr.rel (0) target = $region9
    $region8: #{tpu_custom_call.1} parent=1 // pred_region
      %s27 = ssub.s32 128, 128
      %28 = vsyncadd [#allocation6], %s27
      %s30 = sshll.u32 [#allocation5], 4
      %s31 = int_to_ptr.vmem [resolvable:$true] %s30
      %33 = dma.hbm_to_vmem [thread:$0]  %s1, 128, %s31, [#allocation6]
    $region9: #{tpu_custom_call.1} parent=1 // pred_fallthru
      _
    // Predicated region
    $region10: #{tpu_custom_call.1} parent=1 // pred_check
      _
    $region11: #{tpu_custom_call.1} parent=1 // pred_check_branch
      %35 = sbr.rel (0) target = $region13
    $region12: #{tpu_custom_call.1} parent=1 // pred_region
      %s37 = ssub.s32 128, 128
      %38 = vsyncadd [#allocation6], %s37
      %s40 = sshll.u32 [#allocation7], 4
      %s41 = int_to_ptr.vmem [resolvable:$true] %s40
      %43 = dma.hbm_to_vmem [thread:$0]  %s2, 128, %s41, [#allocation6]
    $region13: #{tpu_custom_call.1} parent=1 // pred_fallthru
      _
    // Predicated region
    $region14: #{tpu_custom_call.1} parent=1 // pred_check
      _
    $region15: #{tpu_custom_call.1} parent=1 // pred_check_branch
      %45 = sbr.rel (0) target = $region17
    $region16: #{tpu_custom_call.1} parent=1 // pred_region
      _
    $region17: #{tpu_custom_call.1} parent=1 // pred_fallthru
      _
    // Predicated region
    $region18: #{tpu_custom_call.1} parent=1 // pred_check
      _
    $region19: #{tpu_custom_call.1} parent=1 // pred_check_branch
      %47 = sbr.rel (0) target = $region21
    $region20: #{tpu_custom_call.1} parent=1 // pred_region
      %s49 = ssub.s32 128, 128
      %50 = vsyncadd [#allocation9], %s49
      %s52 = sshll.u32 [#allocation8], 4
      %s53 = int_to_ptr.vmem [resolvable:$true] %s52
      %55 = dma.hbm_to_vmem [thread:$0]  %s4, 128, %s53, [#allocation9]
    $region21: #{tpu_custom_call.1} parent=1 // pred_fallthru
      _
    // Predicated region
    $region22: #{tpu_custom_call.1} parent=1 // pred_check
      _
    $region23: #{tpu_custom_call.1} parent=1 // pred_check_branch
      %57 = sbr.rel (0) target = $region25
    $region24: #{tpu_custom_call.1} parent=1 // pred_region
      %58 = dma.done [#allocation3], 128
    $region25: #{tpu_custom_call.1} parent=1 // pred_fallthru
      _
    // Predicated region
    $region26: #{tpu_custom_call.1} parent=1 // pred_check
      _
    $region27: #{tpu_custom_call.1} parent=1 // pred_check_branch
      %60 = sbr.rel (0) target = $region29
    $region28: #{tpu_custom_call.1} parent=1 // pred_region
      %61 = dma.done [#allocation6], 128
    $region29: #{tpu_custom_call.1} parent=1 // pred_fallthru
      _
    // Predicated region
    $region30: #{tpu_custom_call.1} parent=1 // pred_check
      _
    $region31: #{tpu_custom_call.1} parent=1 // pred_check_branch
      %63 = sbr.rel (0) target = $region33
    $region32: #{tpu_custom_call.1} parent=1 // pred_region
      %64 = dma.done [#allocation6], 128
    $region33: #{tpu_custom_call.1} parent=1 // pred_fallthru
      _
    // Predicated region
    $region34: #{tpu_custom_call.1} parent=1 // pred_check
      _
    $region35: #{tpu_custom_call.1} parent=1 // pred_check_branch
      %66 = sbr.rel (0) target = $region37
    $region36: #{tpu_custom_call.1} parent=1 // pred_region
      %67 = dma.done [#allocation9], 128
    $region37: #{tpu_custom_call.1} parent=1 // pred_fallthru
      _
    %v68 = vld [vmem:[#allocation2] sm:$0xff]
    %v69 = vld [vmem:[#allocation5] sm:$0xff]
    %v70 = vmul.f32 %v68, %v69
    %71 = vadd.xlane.f32.xlu0 %v70
    %v72 = vpop.xlane.xlu0 %71
    %v73 = vmul.f32 %v72, 10.0
    %v74 = vld [vmem:[#allocation7] sm:$0xff]
    %v75 = vmul.f32 %v68, %v74
    %76 = vadd.xlane.f32.xlu0 %v75
    %v77 = vpop.xlane.xlu0 %76
    %v78 = vmul.f32 %v77, 10.0
    %v79 = vmax.f32 %v73, %v78
    %v80 = vsub.f32 %v73, %v79
    %v81 = vmul.f32 %v80, 1.442695
    %v82 = vpow.pop %v81
    %v83 = vsub.f32 %v78, %v79
    %v84 = vmul.f32 %v83, 1.442695
    %v85 = vpow.pop %v84
    %v86 = vadd.f32 %v82, %v85
    %v87 = vld [vmem:[%s3] sm:$0xff]
    %v88 = vmul.f32 %v68, %v87
    %89 = vadd.xlane.f32.xlu0 %v88
    %v90 = vpop.xlane.xlu0 %89
    %v91 = vmul.f32 %v90, 10.0
    %v92 = vmax.f32 %v79, %v91
    %v93 = vsub.f32 %v79, %v92
    %v94 = vmul.f32 %v93, 1.442695
    %v95 = vpow.pop %v94
    %v96 = vmul.f32 %v86, %v95
    %v97 = vsub.f32 %v91, %v92
    %v98 = vmul.f32 %v97, 1.442695
    %v99 = vpow.pop %v98
    %v100 = vadd.f32 %v96, %v99
    %v101 = vld [vmem:[#allocation8] sm:$0xff]
    %v102 = vmul.f32 %v68, %v101
    %103 = vadd.xlane.f32.xlu0 %v102
    %v104 = vpop.xlane.xlu0 %103
    %v105 = vmul.f32 %v104, 10.0
    %v106 = vmax.f32 %v92, %v105
    %v107 = vsub.f32 %v92, %v106
    %v108 = vmul.f32 %v107, 1.442695
    %v109 = vpow.pop %v108
    %v110 = vmul.f32 %v100, %v109
    %v111 = vsub.f32 %v105, %v106
    %v112 = vmul.f32 %v111, 1.442695
    %v113 = vpow.pop %v112
    %v114 = vadd.f32 %v110, %v113
    %v115 = vlog2.pop %v114
    %v116 = vmul.f32 %v115, 0.6931472
    %v117 = vadd.f32 %v106, %v116
    %v118 = vsub.f32 %v117, %v73
    %s119 = smul.u32 0, 8
    %v120 = vlaneseq
    %v121 = vshrl.u32 %v120, 7
    %v122 = vstv %s119
    %v123 = vadd.s32 %v122, %v121
    %vm124 = vcmp.lt.s32.totalorder %v123, 8
    %v125 = vsel %vm124, %v118, 0.0
    %vm126 = vcmask 7168
    %v127 = vsel %vm126, %v125, 0.0
    %128 = vadd.xlane.f32.xlu0 %v127
    %v129 = vpop.xlane.xlu0 %128
    %v130 = vrot.slane %v129, 4
    %v131 = vadd.f32 %v129, %v130
    %v132 = vrot.slane %v131, 2
    %v133 = vadd.f32 %v131, %v132
    %v134 = vrot.slane %v133, 1
    %v135 = vadd.f32 %v133, %v134
    %s136 = vtos %v135
    %v137 = vstv %s136
    %138 = vst [vmem:[#allocation10] sm:$0x1] %v137
    // Predicated region
    $region38: #{tpu_custom_call.1} parent=1 // pred_check
      _
    $region39: #{tpu_custom_call.1} parent=1 // pred_check_branch
      %140 = sbr.rel (0) target = $region41
    $region40: #{tpu_custom_call.1} parent=1 // pred_region
      %s142 = ssub.s32 16, 16
      %143 = vsyncadd [#allocation4], %s142
      %s145 = sshll.u32 [#allocation10], 4
      %s146 = int_to_ptr.vmem [resolvable:$true] %s145
      %148 = dma.vmem_to_hbm [thread:$0]  %s146, 16, %s5, [#allocation4]
    $region41: #{tpu_custom_call.1} parent=1 // pred_fallthru
      _
    // Predicated region
    $region42: #{tpu_custom_call.1} parent=1 // pred_check
      _
    $region43: #{tpu_custom_call.1} parent=1 // pred_check_branch
      %150 = sbr.rel (0) target = $region45
    $region44: #{tpu_custom_call.1} parent=1 // pred_region
      %151 = dma.done [#allocation4], 16
    $region45: #{tpu_custom_call.1} parent=1 // pred_fallthru
      _
    %152 = vsyncpa [#allocation3], 1
    %153 = vsyncpa [#allocation6], 1
    %154 = vsyncpa [#allocation9], 1
    %155 = vsyncpa [#allocation4], 1

</llo_original>
